<compile_context>
chip_gen: v5e
topology: v5e:2x2
jax: 0.10.0
libtpu: 0.0.40
codegen_flags: <defaults>
</compile_context>

<pallas_src>
import functools

import jax
import jax.numpy as jnp
from jax.experimental import pallas as pl
from jax.experimental.pallas import tpu as pltpu


def _baseseq_kernel(x_ref, vT_ref, cT_ref, w2T_ref, b2T_ref, o_ref):
    # x_ref  : (1, TM)    scalar inputs, rows on the lane axis
    # vT_ref : (H, 1)     fused weight  (w_amp @ W1)^T
    # cT_ref : (H, 1)     fused bias    (b_amp @ W1 + b1)^T
    # w2T_ref: (C, H)     second Linear weight, transposed
    # b2T_ref: (C, 1)     second Linear bias, transposed
    # o_ref  : (C, TM)    log-probabilities (transposed; classes on sublanes)

    x = x_ref[...]                                                   # (1, TM)

    # amplify + Linear(E, H) folded into one broadcast FMA; Dropout = identity; ReLU.
    h = jnp.maximum(vT_ref[...] * x + cT_ref[...], 0.0)              # (H, TM)

    # Linear(H, C) on the MXU, classes on the sublane axis.
    logits = jnp.dot(w2T_ref[...], h,
                     preferred_element_type=jnp.float32) + b2T_ref[...]  # (C, TM)

    # Numerically stable log_softmax over the class (sublane) axis.
    m = jnp.max(logits, axis=0, keepdims=True)                       # (1, TM)
    z = logits - m
    lse = jnp.log(jnp.sum(jnp.exp(z), axis=0, keepdims=True))        # (1, TM)
    o_ref[...] = z - lse


def _round_up(n, m):
    return ((n + m - 1) // m) * m


def _choose_tile(M, tm):
    """Pick a lane-aligned row tile and padded row count.

    Tile is a multiple of 128 (lanes); when there is enough work we make sure the
    grid has >= 2 steps so v7x's second TensorCore gets a shard.
    """
    m_lane = _round_up(max(M, 1), 128)
    tm_eff = min(_round_up(tm, 128), m_lane)
    if m_lane // tm_eff < 2 and m_lane >= 256:
        tm_eff = _round_up((m_lane + 1) // 2, 128)
    M_pad = _round_up(m_lane, tm_eff)
    return tm_eff, M_pad


@functools.partial(jax.jit, static_argnames=("tm",))
def baseseq_forward(x, w_amp, b_amp, w1, b1, w2, b2, *, tm=4096):
    """x: (B, S) float32.  Returns log-probs (B, S, class_num).

    Weights are stored transposed as (in_features, out_features); biases as (1, out).
    """
    B, S = x.shape
    M = B * S
    H = w1.shape[1]
    C = w2.shape[1]

    # ---- wrapper-side algebraic fold of amplify -> first Linear (exact) --------
    vT = (w_amp @ w1).reshape(H, 1)                 # (H, 1)
    cT = ((b_amp @ w1) + b1).reshape(H, 1)          # (H, 1)
    w2T = w2.T                                      # (C, H)
    b2T = b2.reshape(C, 1)                          # (C, 1)

    # ---- row tiling: rows on the lane axis, big tiles, tiny tail pad -----------
    tm_eff, M_pad = _choose_tile(M, tm)
    x_row = x.reshape(1, M).astype(jnp.float32)
    if M_pad != M:
        # TODO(synk): could drop this pad by using a cdiv grid with masked tail
        # blocks; the pad is ~free (4 B/row) so keep the simple, safe form.
        x_row = jnp.pad(x_row, ((0, 0), (0, M_pad - M)))

    grid = (M_pad // tm_eff,)

    cost = pl.CostEstimate(
        flops=M_pad * (2 * C * H + 3 * H + 4 * C),
        transcendentals=M_pad * (C + 1),
        bytes_accessed=4 * (M_pad + C * M_pad + 2 * H + C * H + C),
    )

    out = pl.pallas_call(
        _baseseq_kernel,
        out_shape=jax.ShapeDtypeStruct((C, M_pad), jnp.float32),
        grid_spec=pltpu.PrefetchScalarGridSpec(
            num_scalar_prefetch=0,
            grid=grid,
            in_specs=[
                pl.BlockSpec((1, tm_eff), lambda i: (0, i)),   # x rows (lane-dense)
                pl.BlockSpec((H, 1), lambda i: (0, 0)),        # fused weight (resident)
                pl.BlockSpec((H, 1), lambda i: (0, 0)),        # fused bias (resident)
                pl.BlockSpec((C, H), lambda i: (0, 0)),        # W2^T (resident)
                pl.BlockSpec((C, 1), lambda i: (0, 0)),        # b2^T (resident)
            ],
            out_specs=pl.BlockSpec((C, tm_eff), lambda i: (0, i)),
        ),
        compiler_params=pltpu.CompilerParams(
            dimension_semantics=("parallel",)),
        cost_estimate=cost,
    )(x_row, vT, cT, w2T, b2T)

    # (C, M_pad) -> (M, C) -> (B, S, C); pad rows are dropped here.
    return out[:, :M].T.reshape(B, S, C)


def _reference(x, w_amp, b_amp, w1, b1, w2, b2):
    e = x[..., None] * w_amp[0] + b_amp[0]
    h = jnp.maximum(e @ w1 + b1[0], 0.0)
    logits = h @ w2 + b2[0]
    return jax.nn.log_softmax(logits, axis=-1)


if __name__ == "__main__":
    EMBED, HIDDEN, CLASS_NUM = 32, 32, 8

    key = jax.random.PRNGKey(0)
    kx, ka, kab, k1, k1b, k2, k2b, kx2 = jax.random.split(key, 8)

    # PyTorch Linear stores weight as (out, in); we store the transpose (in, out).
    w_amp = jax.random.normal(ka, (1, EMBED), dtype=jnp.float32) * 0.5
    b_amp = jax.random.normal(kab, (1, EMBED), dtype=jnp.float32) * 0.1
    w1 = jax.random.normal(k1, (EMBED, HIDDEN), dtype=jnp.float32) * (1.0 / EMBED ** 0.5)
    b1 = jax.random.normal(k1b, (1, HIDDEN), dtype=jnp.float32) * 0.1
    w2 = jax.random.normal(k2, (HIDDEN, CLASS_NUM), dtype=jnp.float32) * (1.0 / HIDDEN ** 0.5)
    b2 = jax.random.normal(k2b, (1, CLASS_NUM), dtype=jnp.float32) * 0.1

    # TODO(synk): nn.NLLLoss and train-mode Dropout are not part of the inference
    # forward path; Dropout is the identity here (eval mode).

    # Small case implied by the module: (B, S) scalar sequences.
    B, S = 2, 8
    x = jax.random.normal(kx, (B, S), dtype=jnp.float32)
    y = jax.block_until_ready(baseseq_forward(x, w_amp, b_amp, w1, b1, w2, b2))
    y_ref = _reference(x, w_amp, b_amp, w1, b1, w2, b2)
    assert y.shape == (B, S, CLASS_NUM)
    assert jnp.allclose(y, y_ref, atol=1e-4, rtol=1e-4), "mismatch vs reference (small)"

    # Larger case exercising multi-step grid (M=1200 -> tiles of 640, grid=2) and padding.
    B2, S2 = 4, 300
    x2 = jax.random.normal(kx2, (B2, S2), dtype=jnp.float32)
    y2 = jax.block_until_ready(baseseq_forward(x2, w_amp, b_amp, w1, b1, w2, b2))
    y2_ref = _reference(x2, w_amp, b_amp, w1, b1, w2, b2)
    assert y2.shape == (B2, S2, CLASS_NUM)
    assert jnp.allclose(y2, y2_ref, atol=1e-4, rtol=1e-4), "mismatch vs reference (large)"

    print("KERNEL_OK")
</pallas_src>

<mosaic_0001>
module attributes {stable_mosaic.version = 11 : i64} {
  func.func @_baseseq_kernel(%arg0: i32, %arg1: memref<1x128xf32, #tpu.memory_space<vmem>>, %arg2: memref<32x1xf32, #tpu.memory_space<vmem>>, %arg3: memref<32x1xf32, #tpu.memory_space<vmem>>, %arg4: memref<8x32xf32, #tpu.memory_space<vmem>>, %arg5: memref<8x1xf32, #tpu.memory_space<vmem>>, %arg6: memref<8x128xf32, #tpu.memory_space<vmem>>) attributes {dimension_semantics = [#tpu.dimension_semantics<parallel>], iteration_bounds = array<i64: 1>, scalar_prefetch = 0 : i64, scratch_operands = 0 : i64, tpu.core_type = #tpu.core_type<tc>, window_params = [{transform_indices = @transform_0, window_bounds = array<i64: 1, 128>}, {pipeline_mode = #tpu.pipeline_mode<synchronous>, transform_indices = @transform_1, window_bounds = array<i64: 32, 1>}, {pipeline_mode = #tpu.pipeline_mode<synchronous>, transform_indices = @transform_2, window_bounds = array<i64: 32, 1>}, {pipeline_mode = #tpu.pipeline_mode<synchronous>, transform_indices = @transform_3, window_bounds = array<i64: 8, 32>}, {pipeline_mode = #tpu.pipeline_mode<synchronous>, transform_indices = @transform_4, window_bounds = array<i64: 8, 1>}, {transform_indices = @transform_5, window_bounds = array<i64: 8, 128>}]} {
    %c0 = arith.constant 0 : index
    %c0_0 = arith.constant 0 : index
    %0 = vector.load %arg1[%c0, %c0_0] : memref<1x128xf32, #tpu.memory_space<vmem>>, vector<1x128xf32>
    %c0_1 = arith.constant 0 : index
    %c0_2 = arith.constant 0 : index
    %1 = vector.load %arg2[%c0_1, %c0_2] : memref<32x1xf32, #tpu.memory_space<vmem>>, vector<32x1xf32>
    %2 = vector.broadcast %1 : vector<32x1xf32> to vector<32x128xf32>
    %3 = vector.broadcast %0 : vector<1x128xf32> to vector<32x128xf32>
    %4 = arith.mulf %2, %3 : vector<32x128xf32>
    %c0_3 = arith.constant 0 : index
    %c0_4 = arith.constant 0 : index
    %5 = vector.load %arg3[%c0_3, %c0_4] : memref<32x1xf32, #tpu.memory_space<vmem>>, vector<32x1xf32>
    %6 = vector.broadcast %5 : vector<32x1xf32> to vector<32x128xf32>
    %7 = arith.addf %4, %6 : vector<32x128xf32>
    %cst = arith.constant 0.000000e+00 : f32
    %8 = vector.broadcast %cst : f32 to vector<32x128xf32>
    %9 = arith.maximumf %7, %8 : vector<32x128xf32>
    %c0_5 = arith.constant 0 : index
    %c0_6 = arith.constant 0 : index
    %10 = vector.load %arg4[%c0_5, %c0_6] : memref<8x32xf32, #tpu.memory_space<vmem>>, vector<8x32xf32>
    %cst_7 = arith.constant dense<0.000000e+00> : vector<8x128xf32>
    %11 = tpu.matmul %10, %9, %cst_7 {dimension_numbers = #tpu.dot_dimension_numbers<[1], [0], [0], [1], [0, 0, 1, 1], [], []>} : vector<8x32xf32>, vector<32x128xf32>, vector<8x128xf32> -> vector<8x128xf32>
    %c0_8 = arith.constant 0 : index
    %c0_9 = arith.constant 0 : index
    %12 = vector.load %arg5[%c0_8, %c0_9] : memref<8x1xf32, #tpu.memory_space<vmem>>, vector<8x1xf32>
    %13 = vector.broadcast %12 : vector<8x1xf32> to vector<8x128xf32>
    %14 = arith.addf %11, %13 : vector<8x128xf32>
    %cst_10 = arith.constant dense<0xFF800000> : vector<128xf32>
    %15 = vector.multi_reduction <maximumf>, %14, %cst_10 [0] : vector<8x128xf32> to vector<128xf32>
    %16 = vector.shape_cast %15 : vector<128xf32> to vector<1x128xf32>
    %17 = vector.broadcast %16 : vector<1x128xf32> to vector<8x128xf32>
    %18 = arith.subf %14, %17 : vector<8x128xf32>
    %19 = math.exp %18 : vector<8x128xf32>
    %cst_11 = arith.constant dense<0.000000e+00> : vector<128xf32>
    %20 = vector.multi_reduction <add>, %19, %cst_11 [0] : vector<8x128xf32> to vector<128xf32>
    %21 = vector.shape_cast %20 : vector<128xf32> to vector<1x128xf32>
    %22 = math.log %21 : vector<1x128xf32>
    %23 = vector.broadcast %22 : vector<1x128xf32> to vector<8x128xf32>
    %24 = arith.subf %18, %23 : vector<8x128xf32>
    %c0_12 = arith.constant 0 : index
    %c0_13 = arith.constant 0 : index
    %25 = vector.load %arg6[%c0_12, %c0_13] : memref<8x128xf32, #tpu.memory_space<vmem>>, vector<8x128xf32>
    tpu.vector_store %arg6[%c0_12, %c0_13], %24 {strides = array<i32>} : memref<8x128xf32, #tpu.memory_space<vmem>>, vector<8x128xf32>,
    return
  }
  func.func @transform_0(%arg0: i32) -> (i32, i32) {
    %c0_i32 = arith.constant 0 : i32
    %c0_i32_0 = arith.constant 0 : i32
    return %c0_i32, %arg0 : i32, i32
  }
  func.func @transform_1(%arg0: i32) -> (i32, i32) {
    %c0_i32 = arith.constant 0 : i32
    %c0_i32_0 = arith.constant 0 : i32
    %c0_i32_1 = arith.constant 0 : i32
    return %c0_i32, %c0_i32_0 : i32, i32
  }
  func.func @transform_2(%arg0: i32) -> (i32, i32) {
    %c0_i32 = arith.constant 0 : i32
    %c0_i32_0 = arith.constant 0 : i32
    %c0_i32_1 = arith.constant 0 : i32
    return %c0_i32, %c0_i32_0 : i32, i32
  }
  func.func @transform_3(%arg0: i32) -> (i32, i32) {
    %c0_i32 = arith.constant 0 : i32
    %c0_i32_0 = arith.constant 0 : i32
    %c0_i32_1 = arith.constant 0 : i32
    return %c0_i32, %c0_i32_0 : i32, i32
  }
  func.func @transform_4(%arg0: i32) -> (i32, i32) {
    %c0_i32 = arith.constant 0 : i32
    %c0_i32_0 = arith.constant 0 : i32
    %c0_i32_1 = arith.constant 0 : i32
    return %c0_i32, %c0_i32_0 : i32, i32
  }
  func.func @transform_5(%arg0: i32) -> (i32, i32) {
    %c0_i32 = arith.constant 0 : i32
    %c0_i32_0 = arith.constant 0 : i32
    return %c0_i32, %arg0 : i32, i32
  }
}

</mosaic_0001>

<llo_original>
// kernel: baseseq_forward.1
$region0: #{baseseq_forward.1}
  #allocation0 [shape = 'u32[]', space=smem, size = 0x4, offset = 0x4, fixed_abs, tag = 'smem constant byte address 0x4 - core index']
  #allocation1 [shape = 'u32[72,128]{1,0:T(1,128)}', space=vmem, size = 0x9000, scoped, tag = 'internal scratch']
  %s0 = inlined_call_operand.vmem [shape: f32[1,128], index: 0, kind: input, shape index: {}]
  %s1 = inlined_call_operand.vmem [shape: f32[32,1], index: 1, kind: input, shape index: {}]
  %s2 = inlined_call_operand.vmem [shape: f32[32,1], index: 2, kind: input, shape index: {}]
  %s3 = inlined_call_operand.vmem [shape: f32[8,32], index: 3, kind: input, shape index: {}]
  %s4 = inlined_call_operand.vmem [shape: f32[8,1], index: 4, kind: input, shape index: {}]
  %s5 = inlined_call_operand.vmem [shape: f32[8,128], index: 5, kind: output, shape index: {}]
  %s6 = sld [smem:[#allocation0]]
  $region30: #{baseseq_forward.1} parent=0
    _
  %s8 = ssub.s32 1, %s6
  %s9 = scalar_select 0, %s8, %s6
  // Predicated region
  $region2: #{baseseq_forward.1} parent=0 // pred_check
    _
  $region3: #{baseseq_forward.1} parent=0 // pred_check_branch
    %11 = sbr.rel (0) target = $region5
  $region4: #{baseseq_forward.1} parent=0 // pred_region
    _
  $region5: #{baseseq_forward.1} parent=0 // pred_fallthru
    _
  // Predicated region
  $region6: #{baseseq_forward.1} parent=0 // pred_check
    _
  $region7: #{baseseq_forward.1} parent=0 // pred_check_branch
    %13 = sbr.rel (0) target = $region9
  $region8: #{baseseq_forward.1} parent=0 // pred_region
    _
  $region9: #{baseseq_forward.1} parent=0 // pred_fallthru
    _
  // Predicated region
  $region10: #{baseseq_forward.1} parent=0 // pred_check
    _
  $region11: #{baseseq_forward.1} parent=0 // pred_check_branch
    %15 = sbr.rel (0) target = $region13
  $region12: #{baseseq_forward.1} parent=0 // pred_region
    _
  $region13: #{baseseq_forward.1} parent=0 // pred_fallthru
    _
  // Predicated region
  $region14: #{baseseq_forward.1} parent=0 // pred_check
    _
  $region15: #{baseseq_forward.1} parent=0 // pred_check_branch
    %17 = sbr.rel (0) target = $region17
  $region16: #{baseseq_forward.1} parent=0 // pred_region
    _
  $region17: #{baseseq_forward.1} parent=0 // pred_fallthru
    _
  // Predicated region
  $region18: #{baseseq_forward.1} parent=0 // pred_check
    _
  $region19: #{baseseq_forward.1} parent=0 // pred_check_branch
    %19 = sbr.rel (0) target = $region21
  $region20: #{baseseq_forward.1} parent=0 // pred_region
    _
  $region21: #{baseseq_forward.1} parent=0 // pred_fallthru
    _
  %v20 = vld [vmem:[%s0] sm:$0x1]
  %v21 = vld [vmem:[%s1] sm:$0xff]
  %v22 = vld [vmem:[%s1 + $0x8] sm:$0xff]
  %v23 = vld [vmem:[%s1 + $0x10] sm:$0xff]
  %v24 = vld [vmem:[%s1 + $0x18] sm:$0xff]
  %26 = vset.pattern.permute.xlu0 0
  %27 = vperm.xlu0 %26, %v21
  %v28 = vpop.permute.xlu0 %27
  %31 = vset.pattern.permute.xlu0 0
  %32 = vperm.xlu0 %31, %v22
  %v33 = vpop.permute.xlu0 %32
  %36 = vset.pattern.permute.xlu0 0
  %37 = vperm.xlu0 %36, %v23
  %v38 = vpop.permute.xlu0 %37
  %41 = vset.pattern.permute.xlu0 0
  %42 = vperm.xlu0 %41, %v24
  %v43 = vpop.permute.xlu0 %42
  %v46 = vperm.slane %v20, 0
  %v48 = vmul.f32 %v28, %v46
  %v49 = vmul.f32 %v33, %v46
  %v50 = vmul.f32 %v38, %v46
  %v51 = vmul.f32 %v43, %v46
  %v52 = vld [vmem:[%s2] sm:$0xff]
  %v53 = vld [vmem:[%s2 + $0x8] sm:$0xff]
  %v54 = vld [vmem:[%s2 + $0x10] sm:$0xff]
  %v55 = vld [vmem:[%s2 + $0x18] sm:$0xff]
  %57 = vset.pattern.permute.xlu0 0
  %58 = vperm.xlu0 %57, %v52
  %v59 = vpop.permute.xlu0 %58
  %62 = vset.pattern.permute.xlu0 0
  %63 = vperm.xlu0 %62, %v53
  %v64 = vpop.permute.xlu0 %63
  %67 = vset.pattern.permute.xlu0 0
  %68 = vperm.xlu0 %67, %v54
  %v69 = vpop.permute.xlu0 %68
  %72 = vset.pattern.permute.xlu0 0
  %73 = vperm.xlu0 %72, %v55
  %v74 = vpop.permute.xlu0 %73
  %v76 = vadd.f32 %v48, %v59
  %v77 = vadd.f32 %v49, %v64
  %v78 = vadd.f32 %v50, %v69
  %v79 = vadd.f32 %v51, %v74
  %v80 = vmax.f32 %v76, 0.0
  %v81 = vmax.f32 %v77, 0.0
  %v82 = vmax.f32 %v78, 0.0
  %v83 = vmax.f32 %v79, 0.0
  %v84 = vld [vmem:[%s3] sm:$0xff]
  %v85 = vld [vmem:[%s4] sm:$0xff]
  %87 = vset.pattern.permute.xlu0 0
  %88 = vperm.xlu0 %87, %v85
  %v89 = vpop.permute.xlu0 %88
  %vm91 = vcmask 261120
  %v93 = vsel %vm91, %v84, 0
  %95 = vmatpush.msra.mxu0 0.0
  %96 = vmatpush.msra.mxu0 0.0
  %97 = vmatpush.msra.mxu0 0.0
  %98 = vmatpush.msra.mxu0 0.0
  %99 = vmatpush.msra.mxu0 0.0
  %100 = vmatpush.msra.mxu0 0.0
  %101 = vmatpush.msra.mxu0 0.0
  %102 = vmatpush.msra.mxu0 0.0
  %103 = vmatpush.msra.mxu0 0.0
  %104 = vmatpush.msra.mxu0 0.0
  %105 = vmatpush.msra.mxu0 0.0
  %106 = vmatpush.msra.mxu0 0.0
  %107 = vmatpush.msra.mxu0 %v83
  %108 = vmatpush.msra.mxu0 %v82
  %109 = vmatpush.msra.mxu0 %v81
  %110 = vmatpush.msra.mxu0 %v80
  %111 = vmatmul.f32.gmra.mxu0 %v93
  %v112 = vpop.f32.mrf.mxu0
  %v113 = vadd.f32 %v89, %v112
  %114 = vdwg.mxu0
  %v115 = vrot.slane %v113, 4
  %v116 = vmax.f32 %v113, %v115
  %v117 = vrot.slane %v116, 2
  %v118 = vmax.f32 %v116, %v117
  %v119 = vrot.slane %v118, 1
  %v120 = vmax.f32 %v118, %v119
  %v121 = vsub.f32 %v113, %v120
  %v122 = vmul.f32 %v121, 1.442695
  %v123 = vpow.pop %v122
  %v124 = vrot.slane %v123, 4
  %v125 = vadd.f32 %v123, %v124
  %v126 = vrot.slane %v125, 2
  %v127 = vadd.f32 %v125, %v126
  %v128 = vrot.slane %v127, 1
  %v129 = vadd.f32 %v127, %v128
  %v130 = vlog2.pop %v129
  %v131 = vmul.f32 %v130, 0.6931472
  %v132 = vsub.f32 %v121, %v131
  %133 = vst [vmem:[%s5] sm:$0xff] %v132
  // Predicated region
  $region22: #{baseseq_forward.1} parent=0 // pred_check
    _
  $region23: #{baseseq_forward.1} parent=0 // pred_check_branch
    %135 = sbr.rel (0) target = $region25
  $region24: #{baseseq_forward.1} parent=0 // pred_region
    _
  $region25: #{baseseq_forward.1} parent=0 // pred_fallthru
    _
  // Predicated region
  $region26: #{baseseq_forward.1} parent=0 // pred_check
    _
  $region27: #{baseseq_forward.1} parent=0 // pred_check_branch
    %137 = sbr.rel (0) target = $region29
  $region28: #{baseseq_forward.1} parent=0 // pred_region
    _
  $region29: #{baseseq_forward.1} parent=0 // pred_fallthru
    _

</llo_original>
